<compile_context>
chip_gen: v7x
topology: tpu7x:2x2x1
jax: 0.10.0
libtpu: 0.0.40
codegen_flags: <defaults>
</compile_context>

<pallas_src>
import jax
import jax.numpy as jnp
from jax.experimental import pallas as pl
from jax.experimental.pallas import tpu as pltpu

NUM_INPUTS = 4      # CartPole observation dim
NUM_OUTPUTS = 2     # CartPole action dim
HIDDEN = 64
LANES = 128         # = 2*HIDDEN = vreg lane width
ADV_LANE_OFF = 8    # head lanes [8, 8+NUM_OUTPUTS) carry the pure advantage values

# Packed weight-slab row offsets (all multiples of 8 -> tile-aligned slices in kernel).
W1_OFF, W1_ROWS = 0, 8                 # linear1 weight (4,64) zero-padded into (8,128)
WB_OFF = W1_OFF + W1_ROWS              # fused branch weight [wa|wv] padded to (128,128)
WH_OFF = WB_OFF + LANES                # fused head (adv+val cols & pure-adv cols), (128,128)
B_OFF = WH_OFF + LANES                 # 3 bias rows (b1, [ba|bv], head bias), 8-row block
W_SLAB_ROWS = B_OFF + 8                # 272


def dueling_dqn_kernel(x_ref, w_ref, out_ref):
    x = x_ref[...]                                     # (B, 8) f32, features zero-padded
    w1 = w_ref[W1_OFF:W1_OFF + W1_ROWS, :]             # (8, 128)
    wb = w_ref[WB_OFF:WB_OFF + LANES, :]               # (128, 128)
    wh = w_ref[WH_OFF:WH_OFF + LANES, :]               # (128, 128)
    b1 = w_ref[B_OFF + 0:B_OFF + 1, :]                 # (1, 128)  broadcast rows
    bb = w_ref[B_OFF + 1:B_OFF + 2, :]
    bh = w_ref[B_OFF + 2:B_OFF + 3, :]

    # linear1 + tanh; lanes 64:128 stay exactly 0 (zero weight cols + zero bias).
    h = jnp.tanh(jnp.dot(x, w1, preferred_element_type=jnp.float32) + b1)

    # Fused advantage|value hidden layer: one 128-wide matmul + one tanh.
    branch = jnp.tanh(jnp.dot(h, wb, preferred_element_type=jnp.float32) + bb)

    # Fused head: lanes 0:2 = adv_a + val, lanes 8:10 = pure adv_a, rest exactly 0.
    head = jnp.dot(branch, wh, preferred_element_type=jnp.float32) + bh   # (B, 128)

    # Global advantage mean (over batch AND actions) via a lane-mask reduce.
    lane = jax.lax.broadcasted_iota(jnp.int32, head.shape, 1)
    adv_mask = (lane >= ADV_LANE_OFF) & (lane < ADV_LANE_OFF + NUM_OUTPUTS)
    adv_sum = jnp.sum(jnp.where(adv_mask, head, 0.0))
    adv_mean = adv_sum * (1.0 / (head.shape[0] * NUM_OUTPUTS))

    # Lane-dense store; lanes 0:2 hold val + adv_a - adv_mean (the answer).
    out_ref[...] = (head - adv_mean).astype(out_ref.dtype)


@jax.jit
def dueling_dqn_forward(x, w_slab):
    """x: (B, NUM_INPUTS) f32; w_slab: (272,128) from pack_params. Returns (B, 2)."""
    B = x.shape[0]
    # Feature pad 4 -> 8 stays in the wrapper: under jit it fuses into the launch and
    # keeping the kernel matmul K=8 avoids a sub-sublane contraction.
    x8 = jnp.pad(x, ((0, 0), (0, W1_ROWS - NUM_INPUTS)))
    vmem = pl.BlockSpec(memory_space=pltpu.MemorySpace.VMEM)
    head = pl.pallas_call(
        dueling_dqn_kernel,
        out_shape=jax.ShapeDtypeStruct((B, LANES), jnp.float32),
        in_specs=[vmem, vmem],
        out_specs=vmem,
    )(x8, w_slab)
    return head[:, :NUM_OUTPUTS]


def init_params(key):
    """nn.Linear-style init: U(-1/sqrt(fan_in), 1/sqrt(fan_in)).
    Weights stored transposed as (in_features, out_features)."""
    def linear(key, fan_in, fan_out):
        kw, kb = jax.random.split(key)
        bound = 1.0 / jnp.sqrt(fan_in)
        w = jax.random.uniform(kw, (fan_in, fan_out), jnp.float32, -bound, bound)
        b = jax.random.uniform(kb, (1, fan_out), jnp.float32, -bound, bound)
        return w, b

    k1, k2, k3, k4, k5 = jax.random.split(key, 5)
    w1, b1 = linear(k1, NUM_INPUTS, HIDDEN)
    wa, ba = linear(k2, HIDDEN, HIDDEN)
    wa2, ba2 = linear(k3, HIDDEN, NUM_OUTPUTS)
    wv, bv = linear(k4, HIDDEN, HIDDEN)
    wv2, bv2 = linear(k5, HIDDEN, 1)
    return dict(w1=w1, b1=b1, wa=wa, ba=ba, wa2=wa2, ba2=ba2,
                wv=wv, bv=bv, wv2=wv2, bv2=bv2)


def pack_params(p):
    """Pack all 10 tensors (weights AND biases) into one (272,128) slab."""
    W = jnp.zeros((W_SLAB_ROWS, LANES), jnp.float32)
    # linear1
    W = W.at[W1_OFF:W1_OFF + NUM_INPUTS, 0:HIDDEN].set(p["w1"])
    # fused branch hidden layer [wa | wv]
    W = W.at[WB_OFF:WB_OFF + HIDDEN, 0:HIDDEN].set(p["wa"])
    W = W.at[WB_OFF:WB_OFF + HIDDEN, HIDDEN:2 * HIDDEN].set(p["wv"])
    # fused head:
    #   cols 0..1   : rows 0..63 = wa2[:,a], rows 64..127 = wv2  -> head = adv_a + val
    #   cols 8..9   : rows 0..63 = wa2[:,a]                      -> head = adv_a (for mean)
    W = W.at[WH_OFF:WH_OFF + HIDDEN, 0:NUM_OUTPUTS].set(p["wa2"])
    W = W.at[WH_OFF + HIDDEN:WH_OFF + 2 * HIDDEN, 0:NUM_OUTPUTS].set(
        jnp.broadcast_to(p["wv2"], (HIDDEN, NUM_OUTPUTS)))
    W = W.at[WH_OFF:WH_OFF + HIDDEN,
             ADV_LANE_OFF:ADV_LANE_OFF + NUM_OUTPUTS].set(p["wa2"])
    # biases (rows 264..266; remaining rows stay zero)
    W = W.at[B_OFF + 0, 0:HIDDEN].set(p["b1"][0])
    W = W.at[B_OFF + 1, 0:HIDDEN].set(p["ba"][0])
    W = W.at[B_OFF + 1, HIDDEN:2 * HIDDEN].set(p["bv"][0])
    W = W.at[B_OFF + 2, 0:NUM_OUTPUTS].set(p["ba2"][0] + p["bv2"][0, 0])
    W = W.at[B_OFF + 2,
             ADV_LANE_OFF:ADV_LANE_OFF + NUM_OUTPUTS].set(p["ba2"][0])
    return W


def reference_forward(x, p):
    h = jnp.tanh(x @ p["w1"] + p["b1"])
    adv = jnp.tanh(h @ p["wa"] + p["ba"]) @ p["wa2"] + p["ba2"]
    val = jnp.tanh(h @ p["wv"] + p["bv"]) @ p["wv2"] + p["bv2"]
    return val + adv - jnp.mean(adv)


if __name__ == "__main__":
    key = jax.random.PRNGKey(0)
    kx, kp = jax.random.split(key)
    B = 8  # any B works in one gridless call; stack envs/timesteps here to amortize cost
    x = jax.random.normal(kx, (B, NUM_INPUTS), jnp.float32)
    params = init_params(kp)
    w_slab = pack_params(params)

    out = dueling_dqn_forward(x, w_slab)
    out = jax.block_until_ready(out)

    ref = reference_forward(x, params)
    assert out.shape == (B, NUM_OUTPUTS)
    assert jnp.allclose(out, ref, atol=1e-5, rtol=1e-5)
    print("KERNEL_OK")
</pallas_src>

<mosaic_0001>
module attributes {stable_mosaic.version = 11 : i64} {
  func.func @dueling_dqn_kernel(%arg0: memref<8x8xf32, #tpu.memory_space<vmem>>, %arg1: memref<272x128xf32, #tpu.memory_space<vmem>>, %arg2: memref<8x128xf32, #tpu.memory_space<vmem>>) attributes {dimension_semantics = [], scalar_prefetch = 0 : i64, scratch_operands = 0 : i64, tpu.core_type = #tpu.core_type<tc>} {
    %c0 = arith.constant 0 : index
    %c0_0 = arith.constant 0 : index
    %0 = vector.load %arg0[%c0, %c0_0] : memref<8x8xf32, #tpu.memory_space<vmem>>, vector<8x8xf32>
    %c0_1 = arith.constant 0 : index
    %c0_2 = arith.constant 0 : index
    %1 = vector.load %arg1[%c0_1, %c0_2] : memref<272x128xf32, #tpu.memory_space<vmem>>, vector<8x128xf32>
    %c8 = arith.constant 8 : index
    %c0_3 = arith.constant 0 : index
    %2 = vector.load %arg1[%c8, %c0_3] : memref<272x128xf32, #tpu.memory_space<vmem>>, vector<128x128xf32>
    %c136 = arith.constant 136 : index
    %c0_4 = arith.constant 0 : index
    %3 = vector.load %arg1[%c136, %c0_4] : memref<272x128xf32, #tpu.memory_space<vmem>>, vector<128x128xf32>
    %c264 = arith.constant 264 : index
    %c0_5 = arith.constant 0 : index
    %4 = vector.load %arg1[%c264, %c0_5] : memref<272x128xf32, #tpu.memory_space<vmem>>, vector<1x128xf32>
    %c265 = arith.constant 265 : index
    %c0_6 = arith.constant 0 : index
    %5 = vector.load %arg1[%c265, %c0_6] : memref<272x128xf32, #tpu.memory_space<vmem>>, vector<1x128xf32>
    %c266 = arith.constant 266 : index
    %c0_7 = arith.constant 0 : index
    %6 = vector.load %arg1[%c266, %c0_7] : memref<272x128xf32, #tpu.memory_space<vmem>>, vector<1x128xf32>
    %cst = arith.constant dense<0.000000e+00> : vector<8x128xf32>
    %7 = tpu.matmul %0, %1, %cst {dimension_numbers = #tpu.dot_dimension_numbers<[1], [0], [0], [1], [0, 0, 1, 1], [], []>} : vector<8x8xf32>, vector<8x128xf32>, vector<8x128xf32> -> vector<8x128xf32>
    %8 = vector.broadcast %4 : vector<1x128xf32> to vector<8x128xf32>
    %9 = arith.addf %7, %8 : vector<8x128xf32>
    %10 = math.tanh %9 : vector<8x128xf32>
    %cst_8 = arith.constant dense<0.000000e+00> : vector<8x128xf32>
    %11 = tpu.matmul %10, %2, %cst_8 {dimension_numbers = #tpu.dot_dimension_numbers<[1], [0], [0], [1], [0, 0, 1, 1], [], []>} : vector<8x128xf32>, vector<128x128xf32>, vector<8x128xf32> -> vector<8x128xf32>
    %12 = vector.broadcast %5 : vector<1x128xf32> to vector<8x128xf32>
    %13 = arith.addf %11, %12 : vector<8x128xf32>
    %14 = math.tanh %13 : vector<8x128xf32>
    %cst_9 = arith.constant dense<0.000000e+00> : vector<8x128xf32>
    %15 = tpu.matmul %14, %3, %cst_9 {dimension_numbers = #tpu.dot_dimension_numbers<[1], [0], [0], [1], [0, 0, 1, 1], [], []>} : vector<8x128xf32>, vector<128x128xf32>, vector<8x128xf32> -> vector<8x128xf32>
    %16 = vector.broadcast %6 : vector<1x128xf32> to vector<8x128xf32>
    %17 = arith.addf %15, %16 : vector<8x128xf32>
    %18 = tpu.iota {dimensions = array<i32: 1>} : vector<8x128xi32>
    %c8_i32 = arith.constant 8 : i32
    %19 = vector.broadcast %c8_i32 : i32 to vector<8x128xi32>
    %20 = arith.cmpi sge, %18, %19 : vector<8x128xi32>
    %c10_i32 = arith.constant 10 : i32
    %21 = vector.broadcast %c10_i32 : i32 to vector<8x128xi32>
    %22 = arith.cmpi slt, %18, %21 : vector<8x128xi32>
    %23 = arith.andi %20, %22 : vector<8x128xi1>
    %cst_10 = arith.constant 0.000000e+00 : f32
    %24 = vector.broadcast %cst_10 : f32 to vector<8x128xf32>
    %25 = arith.select %23, %17, %24 : vector<8x128xi1>, vector<8x128xf32>
    %26 = vector.shape_cast %25 : vector<8x128xf32> to vector<1x8x128xf32>
    %cst_11 = arith.constant dense<0.000000e+00> : vector<1xf32>
    %27 = vector.multi_reduction <add>, %26, %cst_11 [1, 2] : vector<1x8x128xf32> to vector<1xf32>
    %28 = vector.shape_cast %27 : vector<1xf32> to vector<1x1x1xf32>
    %29 = vector.extract %28[0, 0, 0] : f32 from vector<1x1x1xf32>
    %cst_12 = arith.constant 6.250000e-02 : f32
    %30 = arith.mulf %29, %cst_12 : f32
    %31 = vector.broadcast %30 : f32 to vector<8x128xf32>
    %32 = arith.subf %17, %31 : vector<8x128xf32>
    %c0_13 = arith.constant 0 : index
    %c0_14 = arith.constant 0 : index
    %33 = vector.load %arg2[%c0_13, %c0_14] : memref<8x128xf32, #tpu.memory_space<vmem>>, vector<8x128xf32>
    tpu.vector_store %arg2[%c0_13, %c0_14], %32 {strides = array<i32>} : memref<8x128xf32, #tpu.memory_space<vmem>>, vector<8x128xf32>,
    return
  }
}

</mosaic_0001>

<llo_original>
// kernel: dueling_dqn_forward.1
$region0: #{dueling_dqn_forward.1}
  #allocation0 [shape = 'u32[]', space=smem, size = 0x4, offset = 0x4, fixed_abs, tag = 'smem constant byte address 0x4 - core index']
  #allocation1 [shape = 'u32[144,128]{1,0:T(1,128)}', space=vmem, size = 0x12000, scoped, tag = 'internal scratch']
  %s0 = inlined_call_operand.vmem [shape: f32[8,8], index: 0, kind: input, shape index: {}]
  %s1 = inlined_call_operand.hbm [shape: f32[272,128], index: 1, kind: input, shape index: {}]
  %s2 = inlined_call_operand.vmem [shape: f32[8,128], index: 2, kind: output, shape index: {}]
  %s3 = sld [smem:[#allocation0]]
  $region22: #{dueling_dqn_forward.1} parent=0
    _
  %s5 = ssub.s32 1, %s3
  %s6 = scalar_select 0, %s5, %s3
  $region1: #{dueling_dqn_forward.1} parent=0
    #allocation2 [shape = 'u8[139264]{0}', space=vmem, size = 0x22000, scoped, tag = 'input window, operand 1, single buffered']
    #allocation3 [shape = 's32[1]{0}', space=sflag, size = 0x4, scoped, tag = 'scoped memory for dueling_dqn_forward.1']
    %7 = vsyncpa [#allocation3], 0
    // Predicated region
    $region2: #{dueling_dqn_forward.1} parent=1 // pred_check
      _
    $region3: #{dueling_dqn_forward.1} parent=1 // pred_check_branch
      %9 = sbr.rel (0) target = $region5
    $region4: #{dueling_dqn_forward.1} parent=1 // pred_region
      _
    $region5: #{dueling_dqn_forward.1} parent=1 // pred_fallthru
      _
    // Predicated region
    $region6: #{dueling_dqn_forward.1} parent=1 // pred_check
      _
    $region7: #{dueling_dqn_forward.1} parent=1 // pred_check_branch
      %11 = sbr.rel (0) target = $region9
    $region8: #{dueling_dqn_forward.1} parent=1 // pred_region
      %s13 = ssub.s32 4352, 4352
      %14 = vsyncadd [#allocation3], %s13
      %s15 = sshll.u32 [#allocation2], 4
      %s16 = int_to_ptr.vmem [resolvable:$true] %s15
      %21 = dma.hbm_to_vmem [thread:$0]  %s1, 4352, %s16, [#allocation3], 128, 128, 8
    $region9: #{dueling_dqn_forward.1} parent=1 // pred_fallthru
      _
    // Predicated region
    $region10: #{dueling_dqn_forward.1} parent=1 // pred_check
      _
    $region11: #{dueling_dqn_forward.1} parent=1 // pred_check_branch
      %23 = sbr.rel (0) target = $region13
    $region12: #{dueling_dqn_forward.1} parent=1 // pred_region
      %24 = dma.done [#allocation3], 4352
    $region13: #{dueling_dqn_forward.1} parent=1 // pred_fallthru
      _
    %v25 = vld [vmem:[%s0] sm:$0xff]
    %v26 = vld [vmem:[#allocation2] sm:$0xff]
    %v27 = vld [vmem:[#allocation2 + $0x8] sm:$0xff]
    %v28 = vld [vmem:[#allocation2 + $0x10] sm:$0xff]
    %v29 = vld [vmem:[#allocation2 + $0x18] sm:$0xff]
    %v30 = vld [vmem:[#allocation2 + $0x20] sm:$0xff]
    %v31 = vld [vmem:[#allocation2 + $0x28] sm:$0xff]
    %v32 = vld [vmem:[#allocation2 + $0x30] sm:$0xff]
    %v33 = vld [vmem:[#allocation2 + $0x38] sm:$0xff]
    %v34 = vld [vmem:[#allocation2 + $0x40] sm:$0xff]
    %v35 = vld [vmem:[#allocation2 + $0x48] sm:$0xff]
    %v36 = vld [vmem:[#allocation2 + $0x50] sm:$0xff]
    %v37 = vld [vmem:[#allocation2 + $0x58] sm:$0xff]
    %v38 = vld [vmem:[#allocation2 + $0x60] sm:$0xff]
    %v39 = vld [vmem:[#allocation2 + $0x68] sm:$0xff]
    %v40 = vld [vmem:[#allocation2 + $0x70] sm:$0xff]
    %v41 = vld [vmem:[#allocation2 + $0x78] sm:$0xff]
    %v42 = vld [vmem:[#allocation2 + $0x80] sm:$0xff]
    %v43 = vld [vmem:[#allocation2 + $0x88] sm:$0xff]
    %v44 = vld [vmem:[#allocation2 + $0x90] sm:$0xff]
    %v45 = vld [vmem:[#allocation2 + $0x98] sm:$0xff]
    %v46 = vld [vmem:[#allocation2 + $0xa0] sm:$0xff]
    %v47 = vld [vmem:[#allocation2 + $0xa8] sm:$0xff]
    %v48 = vld [vmem:[#allocation2 + $0xb0] sm:$0xff]
    %v49 = vld [vmem:[#allocation2 + $0xb8] sm:$0xff]
    %v50 = vld [vmem:[#allocation2 + $0xc0] sm:$0xff]
    %v51 = vld [vmem:[#allocation2 + $0xc8] sm:$0xff]
    %v52 = vld [vmem:[#allocation2 + $0xd0] sm:$0xff]
    %v53 = vld [vmem:[#allocation2 + $0xd8] sm:$0xff]
    %v54 = vld [vmem:[#allocation2 + $0xe0] sm:$0xff]
    %v55 = vld [vmem:[#allocation2 + $0xe8] sm:$0xff]
    %v56 = vld [vmem:[#allocation2 + $0xf0] sm:$0xff]
    %v57 = vld [vmem:[#allocation2 + $0xf8] sm:$0xff]
    %v58 = vld [vmem:[#allocation2 + $0x100] sm:$0xff]
    %v59 = vld [vmem:[#allocation2 + $0x108] sm:$0x1]
    %v60 = vld [vmem:[#allocation2 + $0x109] sm:$0x1]
    %v61 = vld [vmem:[#allocation2 + $0x10a] sm:$0x1]
    %v62 = vlaneseq
    %v63 = vshrl.u32 %v62, 7
    %v64 = vsub.s32 0, %v63
    %v65 = vrot.slane %v59, %v64
    %vm66 = vcmask 64512
    %v68 = vsel %vm66, %v25, 0
    %70 = vmatprep.subr.mxu0 0.0
    %71 = vmatpush1.msra.mxu0 %v26
    %72 = vmatprep.subr.mxu0 0.0
    %73 = vmatpush1.msra.mxu0 0.0
    %74 = vmatprep.subr.mxu0 0.0
    %75 = vmatpush1.msra.mxu0 0.0
    %76 = vmatprep.subr.mxu0 0.0
    %77 = vmatpush1.msra.mxu0 0.0
    %78 = vmatprep.subr.mxu0 0.0
    %79 = vmatpush1.msra.mxu0 0.0
    %80 = vmatprep.subr.mxu0 0.0
    %81 = vmatpush1.msra.mxu0 0.0
    %82 = vmatprep.subr.mxu0 0.0
    %83 = vmatpush1.msra.mxu0 0.0
    %84 = vmatprep.subr.mxu0 0.0
    %85 = vmatpush1.msra.mxu0 0.0
    %86 = vmatprep.subr.mxu0 0.0
    %87 = vmatpush1.msra.mxu0 0.0
    %88 = vmatprep.subr.mxu0 0.0
    %89 = vmatpush1.msra.mxu0 0.0
    %90 = vmatprep.subr.mxu0 0.0
    %91 = vmatpush1.msra.mxu0 0.0
    %92 = vmatprep.subr.mxu0 0.0
    %93 = vmatpush1.msra.mxu0 0.0
    %94 = vmatprep.subr.mxu0 0.0
    %95 = vmatpush1.msra.mxu0 0.0
    %96 = vmatprep.subr.mxu0 0.0
    %97 = vmatpush1.msra.mxu0 0.0
    %98 = vmatprep.subr.mxu0 0.0
    %99 = vmatpush1.msra.mxu0 0.0
    %100 = vmatprep.subr.mxu0 0.0
    %101 = vmatpush1.msra.mxu0 0.0
    %102 = vmatprep.subr.mxu0 0.0
    %103 = vmatpush1.msra.mxu0 0.0
    %104 = vmatprep.subr.mxu0 0.0
    %105 = vmatpush1.msra.mxu0 0.0
    %106 = vmatprep.subr.mxu0 0.0
    %107 = vmatpush1.msra.mxu0 0.0
    %108 = vmatprep.subr.mxu0 0.0
    %109 = vmatpush1.msra.mxu0 0.0
    %110 = vmatprep.subr.mxu0 0.0
    %111 = vmatpush1.msra.mxu0 0.0
    %112 = vmatprep.subr.mxu0 0.0
    %113 = vmatpush1.msra.mxu0 0.0
    %114 = vmatprep.subr.mxu0 0.0
    %115 = vmatpush1.msra.mxu0 0.0
    %116 = vmatprep.subr.mxu0 0.0
    %117 = vmatpush1.msra.mxu0 0.0
    %118 = vmatprep.subr.mxu0 0.0
    %119 = vmatpush1.msra.mxu0 0.0
    %120 = vmatprep.subr.mxu0 0.0
    %121 = vmatpush1.msra.mxu0 0.0
    %122 = vmatprep.subr.mxu0 0.0
    %123 = vmatpush1.msra.mxu0 0.0
    %124 = vmatprep.subr.mxu0 0.0
    %125 = vmatpush1.msra.mxu0 0.0
    %126 = vmatprep.subr.mxu0 0.0
    %127 = vmatpush1.msra.mxu0 0.0
    %128 = vmatprep.subr.mxu0 0.0
    %129 = vmatpush1.msra.mxu0 0.0
    %130 = vmatprep.subr.mxu0 0.0
    %131 = vmatpush1.msra.mxu0 0.0
    %132 = vmatprep.subr.mxu0 0.0
    %133 = vmatpush1.msra.mxu0 0.0
    %134 = vmatprep.mubr.f32.mxu0 0.0
    %135 = vmatmul.mubr.f32.gmra.mrb[0].mxu0 %v68
    %v136 = vpop.f32.mrb[0].mxu0
    %v137 = vadd.f32 %v65, %v136
    %v138 = vpop.f32.mrb[0].mxu0
    %139 = vdwg.mxu0
    %v140 = vtanh.pop %v137
    %v141 = vlaneseq
    %v142 = vshrl.u32 %v141, 7
    %v143 = vsub.s32 0, %v142
    %v144 = vrot.slane %v60, %v143
    %145 = vmatprep.subr.mxu0 0.0
    %146 = vmatpush1.msra.mxu0 %v27
    %147 = vmatprep.subr.mxu0 0.0
    %148 = vmatpush1.msra.mxu0 %v28
    %149 = vmatprep.subr.mxu0 0.0
    %150 = vmatpush1.msra.mxu0 %v29
    %151 = vmatprep.subr.mxu0 0.0
    %152 = vmatpush1.msra.mxu0 %v30
    %153 = vmatprep.subr.mxu0 0.0
    %154 = vmatpush1.msra.mxu0 %v31
    %155 = vmatprep.subr.mxu0 0.0
    %156 = vmatpush1.msra.mxu0 %v32
    %157 = vmatprep.subr.mxu0 0.0
    %158 = vmatpush1.msra.mxu0 %v33
    %159 = vmatprep.subr.mxu0 0.0
    %160 = vmatpush1.msra.mxu0 %v34
    %161 = vmatprep.subr.mxu0 0.0
    %162 = vmatpush1.msra.mxu0 %v35
    %163 = vmatprep.subr.mxu0 0.0
    %164 = vmatpush1.msra.mxu0 %v36
    %165 = vmatprep.subr.mxu0 0.0
    %166 = vmatpush1.msra.mxu0 %v37
    %167 = vmatprep.subr.mxu0 0.0
    %168 = vmatpush1.msra.mxu0 %v38
    %169 = vmatprep.subr.mxu0 0.0
    %170 = vmatpush1.msra.mxu0 %v39
    %171 = vmatprep.subr.mxu0 0.0
    %172 = vmatpush1.msra.mxu0 %v40
    %173 = vmatprep.subr.mxu0 0.0
    %174 = vmatpush1.msra.mxu0 %v41
    %175 = vmatprep.subr.mxu0 0.0
    %176 = vmatpush1.msra.mxu0 %v42
    %177 = vmatprep.subr.mxu0 0.0
    %178 = vmatpush1.msra.mxu0 0.0
    %179 = vmatprep.subr.mxu0 0.0
    %180 = vmatpush1.msra.mxu0 0.0
    %181 = vmatprep.subr.mxu0 0.0
    %182 = vmatpush1.msra.mxu0 0.0
    %183 = vmatprep.subr.mxu0 0.0
    %184 = vmatpush1.msra.mxu0 0.0
    %185 = vmatprep.subr.mxu0 0.0
    %186 = vmatpush1.msra.mxu0 0.0
    %187 = vmatprep.subr.mxu0 0.0
    %188 = vmatpush1.msra.mxu0 0.0
    %189 = vmatprep.subr.mxu0 0.0
    %190 = vmatpush1.msra.mxu0 0.0
    %191 = vmatprep.subr.mxu0 0.0
    %192 = vmatpush1.msra.mxu0 0.0
    %193 = vmatprep.subr.mxu0 0.0
    %194 = vmatpush1.msra.mxu0 0.0
    %195 = vmatprep.subr.mxu0 0.0
    %196 = vmatpush1.msra.mxu0 0.0
    %197 = vmatprep.subr.mxu0 0.0
    %198 = vmatpush1.msra.mxu0 0.0
    %199 = vmatprep.subr.mxu0 0.0
    %200 = vmatpush1.msra.mxu0 0.0
    %201 = vmatprep.subr.mxu0 0.0
    %202 = vmatpush1.msra.mxu0 0.0
    %203 = vmatprep.subr.mxu0 0.0
    %204 = vmatpush1.msra.mxu0 0.0
    %205 = vmatprep.subr.mxu0 0.0
    %206 = vmatpush1.msra.mxu0 0.0
    %207 = vmatprep.subr.mxu0 0.0
    %208 = vmatpush1.msra.mxu0 0.0
    %209 = vmatprep.mubr.f32.mxu0 0.0
    %210 = vmatmul.mubr.f32.gmra.mrb[0].mxu0 %v140
    %v211 = vpop.f32.mrb[0].mxu0
    %v212 = vadd.f32 %v144, %v211
    %v213 = vpop.f32.mrb[0].mxu0
    %214 = vdwg.mxu0
    %v215 = vtanh.pop %v212
    %v216 = vlaneseq
    %v217 = vshrl.u32 %v216, 7
    %v218 = vsub.s32 0, %v217
    %v219 = vrot.slane %v61, %v218
    %220 = vmatprep.subr.mxu0 0.0
    %221 = vmatpush1.msra.mxu0 %v43
    %222 = vmatprep.subr.mxu0 0.0
    %223 = vmatpush1.msra.mxu0 %v44
    %224 = vmatprep.subr.mxu0 0.0
    %225 = vmatpush1.msra.mxu0 %v45
    %226 = vmatprep.subr.mxu0 0.0
    %227 = vmatpush1.msra.mxu0 %v46
    %228 = vmatprep.subr.mxu0 0.0
    %229 = vmatpush1.msra.mxu0 %v47
    %230 = vmatprep.subr.mxu0 0.0
    %231 = vmatpush1.msra.mxu0 %v48
    %232 = vmatprep.subr.mxu0 0.0
    %233 = vmatpush1.msra.mxu0 %v49
    %234 = vmatprep.subr.mxu0 0.0
    %235 = vmatpush1.msra.mxu0 %v50
    %236 = vmatprep.subr.mxu0 0.0
    %237 = vmatpush1.msra.mxu0 %v51
    %238 = vmatprep.subr.mxu0 0.0
    %239 = vmatpush1.msra.mxu0 %v52
    %240 = vmatprep.subr.mxu0 0.0
    %241 = vmatpush1.msra.mxu0 %v53
    %242 = vmatprep.subr.mxu0 0.0
    %243 = vmatpush1.msra.mxu0 %v54
    %244 = vmatprep.subr.mxu0 0.0
    %245 = vmatpush1.msra.mxu0 %v55
    %246 = vmatprep.subr.mxu0 0.0
    %247 = vmatpush1.msra.mxu0 %v56
    %248 = vmatprep.subr.mxu0 0.0
    %249 = vmatpush1.msra.mxu0 %v57
    %250 = vmatprep.subr.mxu0 0.0
    %251 = vmatpush1.msra.mxu0 %v58
    %252 = vmatprep.subr.mxu0 0.0
    %253 = vmatpush1.msra.mxu0 0.0
    %254 = vmatprep.subr.mxu0 0.0
    %255 = vmatpush1.msra.mxu0 0.0
    %256 = vmatprep.subr.mxu0 0.0
    %257 = vmatpush1.msra.mxu0 0.0
    %258 = vmatprep.subr.mxu0 0.0
    %259 = vmatpush1.msra.mxu0 0.0
    %260 = vmatprep.subr.mxu0 0.0
    %261 = vmatpush1.msra.mxu0 0.0
    %262 = vmatprep.subr.mxu0 0.0
    %263 = vmatpush1.msra.mxu0 0.0
    %264 = vmatprep.subr.mxu0 0.0
    %265 = vmatpush1.msra.mxu0 0.0
    %266 = vmatprep.subr.mxu0 0.0
    %267 = vmatpush1.msra.mxu0 0.0
    %268 = vmatprep.subr.mxu0 0.0
    %269 = vmatpush1.msra.mxu0 0.0
    %270 = vmatprep.subr.mxu0 0.0
    %271 = vmatpush1.msra.mxu0 0.0
    %272 = vmatprep.subr.mxu0 0.0
    %273 = vmatpush1.msra.mxu0 0.0
    %274 = vmatprep.subr.mxu0 0.0
    %275 = vmatpush1.msra.mxu0 0.0
    %276 = vmatprep.subr.mxu0 0.0
    %277 = vmatpush1.msra.mxu0 0.0
    %278 = vmatprep.subr.mxu0 0.0
    %279 = vmatpush1.msra.mxu0 0.0
    %280 = vmatprep.subr.mxu0 0.0
    %281 = vmatpush1.msra.mxu0 0.0
    %282 = vmatprep.subr.mxu0 0.0
    %283 = vmatpush1.msra.mxu0 0.0
    %284 = vmatprep.mubr.f32.mxu0 0.0
    %285 = vmatmul.mubr.f32.gmra.mrb[0].mxu0 %v215
    %v286 = vpop.f32.mrb[0].mxu0
    %v287 = vadd.f32 %v219, %v286
    %v288 = vpop.f32.mrb[0].mxu0
    %289 = vdwg.mxu0
    %v290 = vlaneseq
    %v291 = vand.u32 %v290, 127
    %vm292 = vcmp.ge.s32.totalorder %v291, 8
    %vm293 = vcmp.lt.s32.totalorder %v291, 10
    %vm294 = vmand %vm292, %vm293
    %v295 = vsel %vm294, %v287, 0.0
    %296 = vadd.xlane.f32.xlu0 %v295
    %v297 = vpop.xlane.xlu0 %296
    %v298 = vrot.slane %v297, 4
    %v299 = vadd.f32 %v297, %v298
    %v300 = vrot.slane %v299, 2
    %v301 = vadd.f32 %v299, %v300
    %v302 = vrot.slane %v301, 1
    %v303 = vadd.f32 %v301, %v302
    %s304 = vtos %v303
    %s305 = smul.f32 %s304, 0.0625
    %v306 = vstv %s305
    %v307 = vsub.f32 %v287, %v306
    %308 = vst [vmem:[%s2] sm:$0xff] %v307
    // Predicated region
    $region14: #{dueling_dqn_forward.1} parent=1 // pred_check
      _
    $region15: #{dueling_dqn_forward.1} parent=1 // pred_check_branch
      %310 = sbr.rel (0) target = $region17
    $region16: #{dueling_dqn_forward.1} parent=1 // pred_region
      _
    $region17: #{dueling_dqn_forward.1} parent=1 // pred_fallthru
      _
    // Predicated region
    $region18: #{dueling_dqn_forward.1} parent=1 // pred_check
      _
    $region19: #{dueling_dqn_forward.1} parent=1 // pred_check_branch
      %312 = sbr.rel (0) target = $region21
    $region20: #{dueling_dqn_forward.1} parent=1 // pred_region
      _
    $region21: #{dueling_dqn_forward.1} parent=1 // pred_fallthru
      _
    %313 = vsyncpa [#allocation3], 1

</llo_original>
